<compile_context>
chip_gen: v7x
topology: tpu7x:2x2x1
jax: 0.10.0
libtpu: 0.0.40
codegen_flags: <defaults>
</compile_context>

<pallas_src>
import functools

import jax
import jax.numpy as jnp
from jax.experimental import pallas as pl
from jax.experimental.pallas import tpu as pltpu


def dueldqn_kernel(x_ref, w1_ref, b1_ref, w2_ref, b2_ref, wh_ref, bh_ref,
                   q_ref):
    x = x_ref[...]                                                  # (TB, S*k)  bf16

    # fc1 + relu (f32 accumulate, bf16 re-cast for the next MXU pass)
    h1 = jnp.dot(x, w1_ref[...], preferred_element_type=jnp.float32) + b1_ref[...]
    h1 = jnp.maximum(h1, 0.0).astype(x.dtype)                       # (TB, 128)

    # fc2 + relu
    h2 = jnp.dot(h1, w2_ref[...], preferred_element_type=jnp.float32) + b2_ref[...]
    h2 = jnp.maximum(h2, 0.0).astype(x.dtype)                       # (TB, 256)

    # fused dueling head: Q = h2 @ W_head + b_head  (== V + A - mean(A))
    q_ref[...] = (jnp.dot(h2, wh_ref[...], preferred_element_type=jnp.float32)
                  + bh_ref[...])                                    # (TB, A) f32


def _fuse_dueling_head(w3, b3, w4, b4):
    """Fold value/advantage heads + mean-subtraction into one matmul."""
    a = w4.shape[1]
    ones_row = jnp.ones((1, a), jnp.float32)
    center = jnp.eye(a, dtype=jnp.float32) - jnp.full((a, a), 1.0 / a, jnp.float32)
    w_head = w3.astype(jnp.float32) @ ones_row + w4.astype(jnp.float32) @ center
    b_head = b3.astype(jnp.float32) @ ones_row + b4.astype(jnp.float32) @ center
    return w_head, b_head                                           # (256, A), (1, A)


@functools.partial(jax.jit, static_argnames=("block_batch",))
def dueldqn_forward(x, params, *, block_batch=1024):
    """x: (B, state_size, k) or (B, state_size*k); returns Q of shape (B, A), f32."""
    B = x.shape[0]
    x2d = x.reshape(B, -1).astype(jnp.float32)
    in_dim = x2d.shape[1]

    (w1, b1), (w2, b2), (w3, b3), (w4, b4) = params
    action_size = w4.shape[1]
    w_head, b_head = _fuse_dueling_head(w3, b3, w4, b4)

    # Batch tile: multiple of 8 sublanes, capped at block_batch; pad B up to it.
    tb = min(block_batch, ((B + 7) // 8) * 8)
    tb = max(8, ((tb + 7) // 8) * 8)
    b_pad = ((B + tb - 1) // tb) * tb
    if b_pad != B:
        x2d = jnp.pad(x2d, ((0, b_pad - B), (0, 0)))

    # bf16 matmul operands, f32 biases / epilogue.
    xc = x2d.astype(jnp.bfloat16)
    w1c = w1.astype(jnp.bfloat16)
    w2c = w2.astype(jnp.bfloat16)
    whc = w_head.astype(jnp.bfloat16)
    b1f = b1.astype(jnp.float32)
    b2f = b2.astype(jnp.float32)
    bhf = b_head.astype(jnp.float32)

    grid = (b_pad // tb,)
    x_spec = pl.BlockSpec((tb, in_dim), lambda i: (i, 0))
    out_spec = pl.BlockSpec((tb, action_size), lambda i: (i, 0))

    def resident(arr):
        # Block index constant across the grid -> Pallas keeps it resident.
        return pl.BlockSpec(arr.shape, lambda i: (0, 0))

    q = pl.pallas_call(
        dueldqn_kernel,
        out_shape=jax.ShapeDtypeStruct((b_pad, action_size), jnp.float32),
        grid=grid,
        in_specs=[x_spec,
                  resident(w1c), resident(b1f),
                  resident(w2c), resident(b2f),
                  resident(whc), resident(bhf)],
        out_specs=out_spec,
        compiler_params=pltpu.CompilerParams(
            dimension_semantics=("parallel",)),
    )(xc, w1c, b1f, w2c, b2f, whc, bhf)

    return q[:B]


def init_params(key, state_size, action_size, k=4):
    """Mirrors nn.Linear default init (uniform +/- 1/sqrt(fan_in)), weights (in, out)."""
    dims = [(state_size * k, 128), (128, 256), (256, 1), (256, action_size)]
    params = []
    for fan_in, fan_out in dims:
        key, kw, kb = jax.random.split(key, 3)
        bound = 1.0 / jnp.sqrt(jnp.float32(fan_in))
        w = jax.random.uniform(kw, (fan_in, fan_out), jnp.float32, -bound, bound)
        b = jax.random.uniform(kb, (1, fan_out), jnp.float32, -bound, bound)
        params.append((w, b))
    return params


def reference_forward(x, params):
    """Pure-JAX f32 reference matching the torch module."""
    B = x.shape[0]
    h = x.reshape(B, -1).astype(jnp.float32)
    (w1, b1), (w2, b2), (w3, b3), (w4, b4) = params
    h = jnp.maximum(h @ w1 + b1, 0.0)
    h = jnp.maximum(h @ w2 + b2, 0.0)
    value = h @ w3 + b3
    adv = h @ w4 + b4
    return value + adv - jnp.mean(adv, axis=1, keepdims=True)


if __name__ == "__main__":
    key = jax.random.PRNGKey(0)
    state_size, action_size, k = 8, 4, 4
    batch = 2

    kx, kp = jax.random.split(key)
    x = jax.random.normal(kx, (batch, state_size, k), jnp.float32)
    params = init_params(kp, state_size, action_size, k)

    q = dueldqn_forward(x, params)
    q = jax.block_until_ready(q)

    q_ref = reference_forward(x, params)
    assert q.shape == (batch, action_size)
    # bf16 matmul operands -> loosened tolerance vs f32 reference.
    assert jnp.allclose(q, q_ref, atol=5e-2, rtol=5e-2), (q, q_ref)

    print("KERNEL_OK")
</pallas_src>

<mosaic_0001>
module attributes {stable_mosaic.version = 11 : i64} {
  func.func @dueldqn_kernel(%arg0: i32, %arg1: memref<8x32xbf16, #tpu.memory_space<vmem>>, %arg2: memref<32x128xbf16, #tpu.memory_space<vmem>>, %arg3: memref<1x128xf32, #tpu.memory_space<vmem>>, %arg4: memref<128x256xbf16, #tpu.memory_space<vmem>>, %arg5: memref<1x256xf32, #tpu.memory_space<vmem>>, %arg6: memref<256x4xbf16, #tpu.memory_space<vmem>>, %arg7: memref<1x4xf32, #tpu.memory_space<vmem>>, %arg8: memref<8x4xf32, #tpu.memory_space<vmem>>) attributes {dimension_semantics = [#tpu.dimension_semantics<parallel>], iteration_bounds = array<i64: 1>, scalar_prefetch = 0 : i64, scratch_operands = 0 : i64, tpu.core_type = #tpu.core_type<tc>, window_params = [{transform_indices = @transform_0, window_bounds = array<i64: 8, 32>}, {pipeline_mode = #tpu.pipeline_mode<synchronous>, transform_indices = @transform_1, window_bounds = array<i64: 32, 128>}, {pipeline_mode = #tpu.pipeline_mode<synchronous>, transform_indices = @transform_2, window_bounds = array<i64: 1, 128>}, {pipeline_mode = #tpu.pipeline_mode<synchronous>, transform_indices = @transform_3, window_bounds = array<i64: 128, 256>}, {pipeline_mode = #tpu.pipeline_mode<synchronous>, transform_indices = @transform_4, window_bounds = array<i64: 1, 256>}, {pipeline_mode = #tpu.pipeline_mode<synchronous>, transform_indices = @transform_5, window_bounds = array<i64: 256, 4>}, {pipeline_mode = #tpu.pipeline_mode<synchronous>, transform_indices = @transform_6, window_bounds = array<i64: 1, 4>}, {transform_indices = @transform_7, window_bounds = array<i64: 8, 4>}]} {
    %c0 = arith.constant 0 : index
    %c0_0 = arith.constant 0 : index
    %0 = vector.load %arg1[%c0, %c0_0] : memref<8x32xbf16, #tpu.memory_space<vmem>>, vector<8x32xbf16>
    %c0_1 = arith.constant 0 : index
    %c0_2 = arith.constant 0 : index
    %1 = vector.load %arg2[%c0_1, %c0_2] : memref<32x128xbf16, #tpu.memory_space<vmem>>, vector<32x128xbf16>
    %cst = arith.constant dense<0.000000e+00> : vector<8x128xf32>
    %2 = tpu.matmul %0, %1, %cst {dimension_numbers = #tpu.dot_dimension_numbers<[1], [0], [0], [1], [0, 0, 1, 1], [], []>} : vector<8x32xbf16>, vector<32x128xbf16>, vector<8x128xf32> -> vector<8x128xf32>
    %c0_3 = arith.constant 0 : index
    %c0_4 = arith.constant 0 : index
    %3 = vector.load %arg3[%c0_3, %c0_4] : memref<1x128xf32, #tpu.memory_space<vmem>>, vector<1x128xf32>
    %4 = vector.broadcast %3 : vector<1x128xf32> to vector<8x128xf32>
    %5 = arith.addf %2, %4 : vector<8x128xf32>
    %cst_5 = arith.constant 0.000000e+00 : f32
    %6 = vector.broadcast %cst_5 : f32 to vector<8x128xf32>
    %7 = arith.maximumf %5, %6 : vector<8x128xf32>
    %8 = arith.truncf %7 : vector<8x128xf32> to vector<8x128xbf16>
    %c0_6 = arith.constant 0 : index
    %c0_7 = arith.constant 0 : index
    %9 = vector.load %arg4[%c0_6, %c0_7] : memref<128x256xbf16, #tpu.memory_space<vmem>>, vector<128x256xbf16>
    %cst_8 = arith.constant dense<0.000000e+00> : vector<8x256xf32>
    %10 = tpu.matmul %8, %9, %cst_8 {dimension_numbers = #tpu.dot_dimension_numbers<[1], [0], [0], [1], [0, 0, 1, 1], [], []>} : vector<8x128xbf16>, vector<128x256xbf16>, vector<8x256xf32> -> vector<8x256xf32>
    %c0_9 = arith.constant 0 : index
    %c0_10 = arith.constant 0 : index
    %11 = vector.load %arg5[%c0_9, %c0_10] : memref<1x256xf32, #tpu.memory_space<vmem>>, vector<1x256xf32>
    %12 = vector.broadcast %11 : vector<1x256xf32> to vector<8x256xf32>
    %13 = arith.addf %10, %12 : vector<8x256xf32>
    %cst_11 = arith.constant 0.000000e+00 : f32
    %14 = vector.broadcast %cst_11 : f32 to vector<8x256xf32>
    %15 = arith.maximumf %13, %14 : vector<8x256xf32>
    %16 = arith.truncf %15 : vector<8x256xf32> to vector<8x256xbf16>
    %c0_12 = arith.constant 0 : index
    %c0_13 = arith.constant 0 : index
    %17 = vector.load %arg6[%c0_12, %c0_13] : memref<256x4xbf16, #tpu.memory_space<vmem>>, vector<256x4xbf16>
    %cst_14 = arith.constant dense<0.000000e+00> : vector<8x4xf32>
    %18 = tpu.matmul %16, %17, %cst_14 {dimension_numbers = #tpu.dot_dimension_numbers<[1], [0], [0], [1], [0, 0, 1, 1], [], []>} : vector<8x256xbf16>, vector<256x4xbf16>, vector<8x4xf32> -> vector<8x4xf32>
    %c0_15 = arith.constant 0 : index
    %c0_16 = arith.constant 0 : index
    %19 = vector.load %arg7[%c0_15, %c0_16] : memref<1x4xf32, #tpu.memory_space<vmem>>, vector<1x4xf32>
    %20 = vector.broadcast %19 : vector<1x4xf32> to vector<8x4xf32>
    %21 = arith.addf %18, %20 : vector<8x4xf32>
    %c0_17 = arith.constant 0 : index
    %c0_18 = arith.constant 0 : index
    %22 = vector.load %arg8[%c0_17, %c0_18] : memref<8x4xf32, #tpu.memory_space<vmem>>, vector<8x4xf32>
    tpu.vector_store %arg8[%c0_17, %c0_18], %21 {strides = array<i32>} : memref<8x4xf32, #tpu.memory_space<vmem>>, vector<8x4xf32>,
    return
  }
  func.func @transform_0(%arg0: i32) -> (i32, i32) {
    %c0_i32 = arith.constant 0 : i32
    %c0_i32_0 = arith.constant 0 : i32
    return %arg0, %c0_i32 : i32, i32
  }
  func.func @transform_1(%arg0: i32) -> (i32, i32) {
    %c0_i32 = arith.constant 0 : i32
    %c0_i32_0 = arith.constant 0 : i32
    %c0_i32_1 = arith.constant 0 : i32
    return %c0_i32, %c0_i32_0 : i32, i32
  }
  func.func @transform_2(%arg0: i32) -> (i32, i32) {
    %c0_i32 = arith.constant 0 : i32
    %c0_i32_0 = arith.constant 0 : i32
    %c0_i32_1 = arith.constant 0 : i32
    return %c0_i32, %c0_i32_0 : i32, i32
  }
  func.func @transform_3(%arg0: i32) -> (i32, i32) {
    %c0_i32 = arith.constant 0 : i32
    %c0_i32_0 = arith.constant 0 : i32
    %c0_i32_1 = arith.constant 0 : i32
    return %c0_i32, %c0_i32_0 : i32, i32
  }
  func.func @transform_4(%arg0: i32) -> (i32, i32) {
    %c0_i32 = arith.constant 0 : i32
    %c0_i32_0 = arith.constant 0 : i32
    %c0_i32_1 = arith.constant 0 : i32
    return %c0_i32, %c0_i32_0 : i32, i32
  }
  func.func @transform_5(%arg0: i32) -> (i32, i32) {
    %c0_i32 = arith.constant 0 : i32
    %c0_i32_0 = arith.constant 0 : i32
    %c0_i32_1 = arith.constant 0 : i32
    return %c0_i32, %c0_i32_0 : i32, i32
  }
  func.func @transform_6(%arg0: i32) -> (i32, i32) {
    %c0_i32 = arith.constant 0 : i32
    %c0_i32_0 = arith.constant 0 : i32
    %c0_i32_1 = arith.constant 0 : i32
    return %c0_i32, %c0_i32_0 : i32, i32
  }
  func.func @transform_7(%arg0: i32) -> (i32, i32) {
    %c0_i32 = arith.constant 0 : i32
    %c0_i32_0 = arith.constant 0 : i32
    return %arg0, %c0_i32 : i32, i32
  }
}

</mosaic_0001>

<llo_original>
// kernel: dueldqn_forward.1
$region0: #{dueldqn_forward.1}
  #allocation0 [shape = 'u32[]', space=smem, size = 0x4, offset = 0x4, fixed_abs, tag = 'smem constant byte address 0x4 - core index']
  #allocation1 [shape = 'u32[144,128]{1,0:T(1,128)}', space=vmem, size = 0x12000, scoped, tag = 'internal scratch']
  %s0 = inlined_call_operand.vmem [shape: bf16[8,32], index: 0, kind: input, shape index: {}]
  %s1 = inlined_call_operand.vmem [shape: bf16[32,128], index: 1, kind: input, shape index: {}]
  %s2 = inlined_call_operand.vmem [shape: f32[1,128], index: 2, kind: input, shape index: {}]
  %s3 = inlined_call_operand.vmem [shape: bf16[128,256], index: 3, kind: input, shape index: {}]
  %s4 = inlined_call_operand.vmem [shape: f32[1,256], index: 4, kind: input, shape index: {}]
  %s5 = inlined_call_operand.vmem [shape: bf16[256,4], index: 5, kind: input, shape index: {}]
  %s6 = inlined_call_operand.vmem [shape: f32[1,4], index: 6, kind: input, shape index: {}]
  %s7 = inlined_call_operand.vmem [shape: f32[8,4], index: 7, kind: output, shape index: {}]
  %s8 = sld [smem:[#allocation0]]
  $region38: #{dueldqn_forward.1} parent=0
    _
  %s10 = ssub.s32 1, %s8
  %s11 = scalar_select 0, %s10, %s8
  // Predicated region
  $region2: #{dueldqn_forward.1} parent=0 // pred_check
    _
  $region3: #{dueldqn_forward.1} parent=0 // pred_check_branch
    %13 = sbr.rel (0) target = $region5
  $region4: #{dueldqn_forward.1} parent=0 // pred_region
    _
  $region5: #{dueldqn_forward.1} parent=0 // pred_fallthru
    _
  // Predicated region
  $region6: #{dueldqn_forward.1} parent=0 // pred_check
    _
  $region7: #{dueldqn_forward.1} parent=0 // pred_check_branch
    %15 = sbr.rel (0) target = $region9
  $region8: #{dueldqn_forward.1} parent=0 // pred_region
    _
  $region9: #{dueldqn_forward.1} parent=0 // pred_fallthru
    _
  // Predicated region
  $region10: #{dueldqn_forward.1} parent=0 // pred_check
    _
  $region11: #{dueldqn_forward.1} parent=0 // pred_check_branch
    %17 = sbr.rel (0) target = $region13
  $region12: #{dueldqn_forward.1} parent=0 // pred_region
    _
  $region13: #{dueldqn_forward.1} parent=0 // pred_fallthru
    _
  // Predicated region
  $region14: #{dueldqn_forward.1} parent=0 // pred_check
    _
  $region15: #{dueldqn_forward.1} parent=0 // pred_check_branch
    %19 = sbr.rel (0) target = $region17
  $region16: #{dueldqn_forward.1} parent=0 // pred_region
    _
  $region17: #{dueldqn_forward.1} parent=0 // pred_fallthru
    _
  // Predicated region
  $region18: #{dueldqn_forward.1} parent=0 // pred_check
    _
  $region19: #{dueldqn_forward.1} parent=0 // pred_check_branch
    %21 = sbr.rel (0) target = $region21
  $region20: #{dueldqn_forward.1} parent=0 // pred_region
    _
  $region21: #{dueldqn_forward.1} parent=0 // pred_fallthru
    _
  // Predicated region
  $region22: #{dueldqn_forward.1} parent=0 // pred_check
    _
  $region23: #{dueldqn_forward.1} parent=0 // pred_check_branch
    %23 = sbr.rel (0) target = $region25
  $region24: #{dueldqn_forward.1} parent=0 // pred_region
    _
  $region25: #{dueldqn_forward.1} parent=0 // pred_fallthru
    _
  // Predicated region
  $region26: #{dueldqn_forward.1} parent=0 // pred_check
    _
  $region27: #{dueldqn_forward.1} parent=0 // pred_check_branch
    %25 = sbr.rel (0) target = $region29
  $region28: #{dueldqn_forward.1} parent=0 // pred_region
    _
  $region29: #{dueldqn_forward.1} parent=0 // pred_fallthru
    _
  %v27 = vld [vmem:[%s0] sm:$0xf]
  %v28 = vld [vmem:[%s1] sm:$0xf]
  %v29 = vld [vmem:[%s1 + $0x4] sm:$0xf]
  %v30 = vld [vmem:[%s1 + $0x8] sm:$0xf]
  %v31 = vld [vmem:[%s1 + $0xc] sm:$0xf]
  %v32 = vld [vmem:[%s2] sm:$0x1]
  %v34 = vlaneseq
  %v35 = vshrl.u32 %v34, 7
  %v36 = vsub.s32 0, %v35
  %v37 = vrot.slane %v32, %v36
  %v43 = vunpack.c.l.b16 %v28
  %v44 = vunpack.c.l.b16 %v29
  %v45 = vunpack.c.l.b16 %v30
  %v46 = vunpack.c.l.b16 %v31
  %v47 = vpack.c.b16 %v44, %v43
  %v48 = vpack.c.b16 %v46, %v45
  %vm51 = vcmask 261120
  %v53 = vsel %vm51, %v27, 0
  %55 = vmatprep.subr.bf16.mxu0 0
  %56 = vmatpush1.bf16.msra.mxu0 %v47
  %57 = vmatprep.subr.bf16.mxu0 0
  %58 = vmatpush1.bf16.msra.mxu0 %v48
  %59 = vmatprep.subr.bf16.mxu0 0
  %60 = vmatpush1.bf16.msra.mxu0 0
  %61 = vmatprep.subr.bf16.mxu0 0
  %62 = vmatpush1.bf16.msra.mxu0 0
  %63 = vmatprep.subr.bf16.mxu0 0
  %64 = vmatpush1.bf16.msra.mxu0 0
  %65 = vmatprep.subr.bf16.mxu0 0
  %66 = vmatpush1.bf16.msra.mxu0 0
  %67 = vmatprep.subr.bf16.mxu0 0
  %68 = vmatpush1.bf16.msra.mxu0 0
  %69 = vmatprep.subr.bf16.mxu0 0
  %70 = vmatpush1.bf16.msra.mxu0 0
  %71 = vmatprep.subr.bf16.mxu0 0
  %72 = vmatpush1.bf16.msra.mxu0 0
  %73 = vmatprep.subr.bf16.mxu0 0
  %74 = vmatpush1.bf16.msra.mxu0 0
  %75 = vmatprep.subr.bf16.mxu0 0
  %76 = vmatpush1.bf16.msra.mxu0 0
  %77 = vmatprep.subr.bf16.mxu0 0
  %78 = vmatpush1.bf16.msra.mxu0 0
  %79 = vmatprep.subr.bf16.mxu0 0
  %80 = vmatpush1.bf16.msra.mxu0 0
  %81 = vmatprep.subr.bf16.mxu0 0
  %82 = vmatpush1.bf16.msra.mxu0 0
  %83 = vmatprep.subr.bf16.mxu0 0
  %84 = vmatpush1.bf16.msra.mxu0 0
  %85 = vmatprep.subr.bf16.mxu0 0
  %86 = vmatpush1.bf16.msra.mxu0 0
  %87 = vmatprep.mubr.bf16.mxu0 0
  %88 = vmatmul.mubr.bf16.gmra.mrb[0].mxu0 %v53
  %v89 = vpop.f32.mrb[0].mxu0
  %v90 = vadd.f32 %v37, %v89
  %v91 = vpop.f32.mrb[0].mxu0
  %v92 = vpop.f32.mrb[0].mxu0
  %v93 = vpop.f32.mrb[0].mxu0
  %94 = vdwg.mxu0
  %v95 = vmax.f32 %v90, 0.0
  %v96 = vpack.c.bf16 %v95, %v95
  %v97 = vld [vmem:[%s3] sm:$0xff]
  %v98 = vld [vmem:[%s3 + $0x8] sm:$0xff]
  %v99 = vld [vmem:[%s3 + $0x10] sm:$0xff]
  %v100 = vld [vmem:[%s3 + $0x18] sm:$0xff]
  %v101 = vld [vmem:[%s3 + $0x20] sm:$0xff]
  %v102 = vld [vmem:[%s3 + $0x28] sm:$0xff]
  %v103 = vld [vmem:[%s3 + $0x30] sm:$0xff]
  %v104 = vld [vmem:[%s3 + $0x38] sm:$0xff]
  %v105 = vld [vmem:[%s3 + $0x40] sm:$0xff]
  %v106 = vld [vmem:[%s3 + $0x48] sm:$0xff]
  %v107 = vld [vmem:[%s3 + $0x50] sm:$0xff]
  %v108 = vld [vmem:[%s3 + $0x58] sm:$0xff]
  %v109 = vld [vmem:[%s3 + $0x60] sm:$0xff]
  %v110 = vld [vmem:[%s3 + $0x68] sm:$0xff]
  %v111 = vld [vmem:[%s3 + $0x70] sm:$0xff]
  %v112 = vld [vmem:[%s3 + $0x78] sm:$0xff]
  %v113 = vld [vmem:[%s4] sm:$0x3]
  %v115 = vlaneseq
  %v116 = vshrl.u32 %v115, 7
  %v117 = vsub.s32 0, %v116
  %v118 = vrot.slane %v113, %v117
  %v119 = vlaneseq
  %v120 = vshrl.u32 %v119, 7
  %v121 = vsub.s32 1, %v120
  %v122 = vrot.slane %v113, %v121
  %v141 = vunpack.c.l.b16 %v97
  %v142 = vunpack.c.h.b16 %v97
  %v143 = vunpack.c.l.b16 %v98
  %v144 = vunpack.c.h.b16 %v98
  %v145 = vunpack.c.l.b16 %v99
  %v146 = vunpack.c.h.b16 %v99
  %v147 = vunpack.c.l.b16 %v100
  %v148 = vunpack.c.h.b16 %v100
  %v149 = vunpack.c.l.b16 %v101
  %v150 = vunpack.c.h.b16 %v101
  %v151 = vunpack.c.l.b16 %v102
  %v152 = vunpack.c.h.b16 %v102
  %v153 = vunpack.c.l.b16 %v103
  %v154 = vunpack.c.h.b16 %v103
  %v155 = vunpack.c.l.b16 %v104
  %v156 = vunpack.c.h.b16 %v104
  %v157 = vunpack.c.l.b16 %v105
  %v158 = vunpack.c.h.b16 %v105
  %v159 = vunpack.c.l.b16 %v106
  %v160 = vunpack.c.h.b16 %v106
  %v161 = vunpack.c.l.b16 %v107
  %v162 = vunpack.c.h.b16 %v107
  %v163 = vunpack.c.l.b16 %v108
  %v164 = vunpack.c.h.b16 %v108
  %v165 = vunpack.c.l.b16 %v109
  %v166 = vunpack.c.h.b16 %v109
  %v167 = vunpack.c.l.b16 %v110
  %v168 = vunpack.c.h.b16 %v110
  %v169 = vunpack.c.l.b16 %v111
  %v170 = vunpack.c.h.b16 %v111
  %v171 = vunpack.c.l.b16 %v112
  %v172 = vunpack.c.h.b16 %v112
  %v173 = vpack.c.b16 %v143, %v141
  %v174 = vpack.c.b16 %v144, %v142
  %v175 = vpack.c.b16 %v147, %v145
  %v176 = vpack.c.b16 %v148, %v146
  %v177 = vpack.c.b16 %v151, %v149
  %v178 = vpack.c.b16 %v152, %v150
  %v179 = vpack.c.b16 %v155, %v153
  %v180 = vpack.c.b16 %v156, %v154
  %v181 = vpack.c.b16 %v159, %v157
  %v182 = vpack.c.b16 %v160, %v158
  %v183 = vpack.c.b16 %v163, %v161
  %v184 = vpack.c.b16 %v164, %v162
  %v185 = vpack.c.b16 %v167, %v165
  %v186 = vpack.c.b16 %v168, %v166
  %v187 = vpack.c.b16 %v171, %v169
  %v188 = vpack.c.b16 %v172, %v170
  %205 = vmatprep.subr.bf16.mxu0 %v174
  %206 = vmatpush1.bf16.msra.mxu0 %v173
  %207 = vmatprep.subr.bf16.mxu0 %v176
  %208 = vmatpush1.bf16.msra.mxu0 %v175
  %209 = vmatprep.subr.bf16.mxu0 %v178
  %210 = vmatpush1.bf16.msra.mxu0 %v177
  %211 = vmatprep.subr.bf16.mxu0 %v180
  %212 = vmatpush1.bf16.msra.mxu0 %v179
  %213 = vmatprep.subr.bf16.mxu0 %v182
  %214 = vmatpush1.bf16.msra.mxu0 %v181
  %215 = vmatprep.subr.bf16.mxu0 %v184
  %216 = vmatpush1.bf16.msra.mxu0 %v183
  %217 = vmatprep.subr.bf16.mxu0 %v186
  %218 = vmatpush1.bf16.msra.mxu0 %v185
  %219 = vmatprep.subr.bf16.mxu0 %v188
  %220 = vmatpush1.bf16.msra.mxu0 %v187
  %221 = vmatprep.subr.bf16.mxu0 0
  %222 = vmatpush1.bf16.msra.mxu0 0
  %223 = vmatprep.subr.bf16.mxu0 0
  %224 = vmatpush1.bf16.msra.mxu0 0
  %225 = vmatprep.subr.bf16.mxu0 0
  %226 = vmatpush1.bf16.msra.mxu0 0
  %227 = vmatprep.subr.bf16.mxu0 0
  %228 = vmatpush1.bf16.msra.mxu0 0
  %229 = vmatprep.subr.bf16.mxu0 0
  %230 = vmatpush1.bf16.msra.mxu0 0
  %231 = vmatprep.subr.bf16.mxu0 0
  %232 = vmatpush1.bf16.msra.mxu0 0
  %233 = vmatprep.subr.bf16.mxu0 0
  %234 = vmatpush1.bf16.msra.mxu0 0
  %235 = vmatprep.subr.bf16.mxu0 0
  %236 = vmatpush1.bf16.msra.mxu0 0
  %237 = vmatprep.mubr.bf16.mxu0 0
  %238 = vmatmul.mubr.bf16.gmra.mrb[0].mxu0 %v96
  %v239 = vpop.f32.mrb[0].mxu0
  %v240 = vadd.f32 %v118, %v239
  %v241 = vpop.f32.mrb[0].mxu0
  %v242 = vadd.f32 %v122, %v241
  %v243 = vpop.f32.mrb[0].mxu0
  %v244 = vpop.f32.mrb[0].mxu0
  %245 = vdwg.mxu0
  %v246 = vmax.f32 %v240, 0.0
  %v247 = vmax.f32 %v242, 0.0
  %v248 = vpack.c.bf16 %v246, %v246
  %v249 = vpack.c.bf16 %v247, %v247
  %v250 = vld [vmem:[%s5] sm:$0xf]
  %v251 = vld [vmem:[%s5 + $0x4] sm:$0xf]
  %v252 = vld [vmem:[%s5 + $0x8] sm:$0xf]
  %v253 = vld [vmem:[%s5 + $0xc] sm:$0xf]
  %v254 = vld [vmem:[%s5 + $0x10] sm:$0xf]
  %v255 = vld [vmem:[%s5 + $0x14] sm:$0xf]
  %v256 = vld [vmem:[%s5 + $0x18] sm:$0xf]
  %v257 = vld [vmem:[%s5 + $0x1c] sm:$0xf]
  %v258 = vld [vmem:[%s5 + $0x20] sm:$0xf]
  %v259 = vld [vmem:[%s5 + $0x24] sm:$0xf]
  %v260 = vld [vmem:[%s5 + $0x28] sm:$0xf]
  %v261 = vld [vmem:[%s5 + $0x2c] sm:$0xf]
  %v262 = vld [vmem:[%s5 + $0x30] sm:$0xf]
  %v263 = vld [vmem:[%s5 + $0x34] sm:$0xf]
  %v264 = vld [vmem:[%s5 + $0x38] sm:$0xf]
  %v265 = vld [vmem:[%s5 + $0x3c] sm:$0xf]
  %v266 = vld [vmem:[%s5 + $0x40] sm:$0xf]
  %v267 = vld [vmem:[%s5 + $0x44] sm:$0xf]
  %v268 = vld [vmem:[%s5 + $0x48] sm:$0xf]
  %v269 = vld [vmem:[%s5 + $0x4c] sm:$0xf]
  %v270 = vld [vmem:[%s5 + $0x50] sm:$0xf]
  %v271 = vld [vmem:[%s5 + $0x54] sm:$0xf]
  %v272 = vld [vmem:[%s5 + $0x58] sm:$0xf]
  %v273 = vld [vmem:[%s5 + $0x5c] sm:$0xf]
  %v274 = vld [vmem:[%s5 + $0x60] sm:$0xf]
  %v275 = vld [vmem:[%s5 + $0x64] sm:$0xf]
  %v276 = vld [vmem:[%s5 + $0x68] sm:$0xf]
  %v277 = vld [vmem:[%s5 + $0x6c] sm:$0xf]
  %v278 = vld [vmem:[%s5 + $0x70] sm:$0xf]
  %v279 = vld [vmem:[%s5 + $0x74] sm:$0xf]
  %v280 = vld [vmem:[%s5 + $0x78] sm:$0xf]
  %v281 = vld [vmem:[%s5 + $0x7c] sm:$0xf]
  %v282 = vld [vmem:[%s6] sm:$0x1]
  %v284 = vlaneseq
  %v285 = vshrl.u32 %v284, 7
  %v286 = vsub.s32 0, %v285
  %v287 = vrot.slane %v282, %v286
  %v321 = vunpack.c.l.b16 %v250
  %v322 = vunpack.c.l.b16 %v251
  %v323 = vunpack.c.l.b16 %v252
  %v324 = vunpack.c.l.b16 %v253
  %v325 = vunpack.c.l.b16 %v254
  %v326 = vunpack.c.l.b16 %v255
  %v327 = vunpack.c.l.b16 %v256
  %v328 = vunpack.c.l.b16 %v257
  %v329 = vunpack.c.l.b16 %v258
  %v330 = vunpack.c.l.b16 %v259
  %v331 = vunpack.c.l.b16 %v260
  %v332 = vunpack.c.l.b16 %v261
  %v333 = vunpack.c.l.b16 %v262
  %v334 = vunpack.c.l.b16 %v263
  %v335 = vunpack.c.l.b16 %v264
  %v336 = vunpack.c.l.b16 %v265
  %v337 = vunpack.c.l.b16 %v266
  %v338 = vunpack.c.l.b16 %v267
  %v339 = vunpack.c.l.b16 %v268
  %v340 = vunpack.c.l.b16 %v269
  %v341 = vunpack.c.l.b16 %v270
  %v342 = vunpack.c.l.b16 %v271
  %v343 = vunpack.c.l.b16 %v272
  %v344 = vunpack.c.l.b16 %v273
  %v345 = vunpack.c.l.b16 %v274
  %v346 = vunpack.c.l.b16 %v275
  %v347 = vunpack.c.l.b16 %v276
  %v348 = vunpack.c.l.b16 %v277
  %v349 = vunpack.c.l.b16 %v278
  %v350 = vunpack.c.l.b16 %v279
  %v351 = vunpack.c.l.b16 %v280
  %v352 = vunpack.c.l.b16 %v281
  %v353 = vpack.c.b16 %v322, %v321
  %v354 = vpack.c.b16 %v324, %v323
  %v355 = vpack.c.b16 %v326, %v325
  %v356 = vpack.c.b16 %v328, %v327
  %v357 = vpack.c.b16 %v330, %v329
  %v358 = vpack.c.b16 %v332, %v331
  %v359 = vpack.c.b16 %v334, %v333
  %v360 = vpack.c.b16 %v336, %v335
  %v361 = vpack.c.b16 %v338, %v337
  %v362 = vpack.c.b16 %v340, %v339
  %v363 = vpack.c.b16 %v342, %v341
  %v364 = vpack.c.b16 %v344, %v343
  %v365 = vpack.c.b16 %v346, %v345
  %v366 = vpack.c.b16 %v348, %v347
  %v367 = vpack.c.b16 %v350, %v349
  %v368 = vpack.c.b16 %v352, %v351
  %385 = vmatprep.subr.bf16.mxu0 0
  %386 = vmatpush1.bf16.msra.mxu0 %v353
  %387 = vmatprep.subr.bf16.mxu0 0
  %388 = vmatpush1.bf16.msra.mxu0 %v354
  %389 = vmatprep.subr.bf16.mxu0 0
  %390 = vmatpush1.bf16.msra.mxu0 %v355
  %391 = vmatprep.subr.bf16.mxu0 0
  %392 = vmatpush1.bf16.msra.mxu0 %v356
  %393 = vmatprep.subr.bf16.mxu0 0
  %394 = vmatpush1.bf16.msra.mxu0 %v357
  %395 = vmatprep.subr.bf16.mxu0 0
  %396 = vmatpush1.bf16.msra.mxu0 %v358
  %397 = vmatprep.subr.bf16.mxu0 0
  %398 = vmatpush1.bf16.msra.mxu0 %v359
  %399 = vmatprep.subr.bf16.mxu0 0
  %400 = vmatpush1.bf16.msra.mxu0 %v360
  %401 = vmatprep.subr.bf16.mxu0 0
  %402 = vmatpush1.bf16.msra.mxu0 %v361
  %403 = vmatprep.subr.bf16.mxu0 0
  %404 = vmatpush1.bf16.msra.mxu0 %v362
  %405 = vmatprep.subr.bf16.mxu0 0
  %406 = vmatpush1.bf16.msra.mxu0 %v363
  %407 = vmatprep.subr.bf16.mxu0 0
  %408 = vmatpush1.bf16.msra.mxu0 %v364
  %409 = vmatprep.subr.bf16.mxu0 0
  %410 = vmatpush1.bf16.msra.mxu0 %v365
  %411 = vmatprep.subr.bf16.mxu0 0
  %412 = vmatpush1.bf16.msra.mxu0 %v366
  %413 = vmatprep.subr.bf16.mxu0 0
  %414 = vmatpush1.bf16.msra.mxu0 %v367
  %415 = vmatprep.subr.bf16.mxu0 0
  %416 = vmatpush1.bf16.msra.mxu0 %v368
  %417 = vmatprep.mubr.bf16.mxu0 %v249
  %418 = vmatmul.mubr.bf16.gmra.mrb[0].mxu0 %v248
  %v419 = vpop.f32.mrb[0].mxu0
  %v420 = vadd.f32 %v287, %v419
  %v421 = vpop.f32.mrb[0].mxu0
  %v422 = vpop.f32.mrb[0].mxu0
  %v423 = vpop.f32.mrb[0].mxu0
  %424 = vdwg.mxu0
  %vm425 = vcmask 31744
  %426 = vst.msk [vmem:[%s7] sm:$0xff] %vm425, %v420
  // Predicated region
  $region30: #{dueldqn_forward.1} parent=0 // pred_check
    _
  $region31: #{dueldqn_forward.1} parent=0 // pred_check_branch
    %428 = sbr.rel (0) target = $region33
  $region32: #{dueldqn_forward.1} parent=0 // pred_region
    _
  $region33: #{dueldqn_forward.1} parent=0 // pred_fallthru
    _
  // Predicated region
  $region34: #{dueldqn_forward.1} parent=0 // pred_check
    _
  $region35: #{dueldqn_forward.1} parent=0 // pred_check_branch
    %430 = sbr.rel (0) target = $region37
  $region36: #{dueldqn_forward.1} parent=0 // pred_region
    _
  $region37: #{dueldqn_forward.1} parent=0 // pred_fallthru
    _

</llo_original>
